<compile_context>
chip_gen: v5e
topology: v5e:2x2
jax: 0.10.0
libtpu: 0.0.40
codegen_flags: <defaults>
</compile_context>

<pallas_src>
import functools
import math

import jax
import jax.numpy as jnp
from jax.experimental import pallas as pl
from jax.experimental.pallas import tpu as pltpu

_INV_SQRT2 = 0.7071067811865476  # 1/sqrt(2): multiply (VALU) instead of divide


def _round_up(v, m):
    return ((v + m - 1) // m) * m


def _gelu(h, approximate):
    if approximate:
        # tanh-approx GELU: transcendental lands on the EUP slot instead of a
        # long erf polynomial on the VALU.  Numerics differ slightly from the
        # nn.GELU default, so this is opt-in.
        return jax.nn.gelu(h, approximate=True)
    return 0.5 * h * (1.0 + jax.lax.erf(h * _INV_SQRT2))


# ----------------------------- kernels --------------------------------------


def _mlp_kernel_resident(x_ref, w1_ref, b1_ref, w2_ref, b2_ref, o_ref, *,
                         approximate):
    """Whole hidden dim resident in VMEM: fused fc1 -> GELU -> fc2 per row tile."""
    h = jnp.dot(x_ref[...], w1_ref[...], preferred_element_type=jnp.float32)
    h = _gelu(h + b1_ref[...].astype(jnp.float32), approximate)
    y = jnp.dot(h.astype(w2_ref.dtype), w2_ref[...],
                preferred_element_type=jnp.float32)
    o_ref[...] = (y + b2_ref[...].astype(jnp.float32)).astype(o_ref.dtype)


def _mlp_kernel_ktiled(x_ref, w1_ref, b1_ref, w2_ref, b2_ref, o_ref, acc_ref, *,
                       approximate):
    """Hidden dim streamed in tile_k slices; f32 accumulator finalized at last k."""
    k = pl.program_id(1)

    h = jnp.dot(x_ref[...], w1_ref[...], preferred_element_type=jnp.float32)
    h = _gelu(h + b1_ref[...].astype(jnp.float32), approximate)
    part = jnp.dot(h.astype(w2_ref.dtype), w2_ref[...],
                   preferred_element_type=jnp.float32)

    @pl.when(k == 0)
    def _init():
        acc_ref[...] = part          # fold init into first iteration

    @pl.when(k > 0)
    def _accum():
        acc_ref[...] += part

    @pl.when(k == pl.num_programs(1) - 1)
    def _finalize():
        o_ref[...] = (acc_ref[...] + b2_ref[...].astype(jnp.float32)
                      ).astype(o_ref.dtype)


# ----------------------------- wrapper ---------------------------------------


def _vmem_caps():
    """(tile-sizing budget, vmem_limit ceiling) in bytes, per detected chip."""
    cap = 64 << 20  # conservative default = v7x per-TC VMEM
    try:
        info = pltpu.get_tpu_info()
        cap = int(getattr(info, "vmem_capacity_bytes", cap) or cap)
    except Exception:
        pass
    headroom = 8 << 20
    budget = max(16 << 20, min(int(cap * 0.8), max(cap - headroom, 16 << 20)))
    limit_ceiling = max(32 << 20, cap - headroom)
    return budget, limit_ceiling


def mlp_pallas(x, w1, b1, w2, b2, *, tile_m=None, tile_k=None,
               approximate_gelu=False, vmem_limit_bytes=None):
    """x: [..., in_features] -> [..., out_features]."""
    orig_shape = x.shape
    d_in = orig_shape[-1]
    d_hidden = w1.shape[1]
    d_out = w2.shape[1]
    assert w1.shape == (d_in, d_hidden)
    assert w2.shape == (d_hidden, d_out)
    assert b1.shape == (d_hidden,) and b2.shape == (d_out,)

    x2 = x.reshape(-1, d_in)
    m = x2.shape[0]
    x_bytes = jnp.dtype(x2.dtype).itemsize
    w_bytes = jnp.dtype(w1.dtype).itemsize

    budget, limit_ceiling = _vmem_caps()

    # Lane/sublane-padded dims: approximate true in-VMEM tile footprints.
    d_in_l = _round_up(d_in, 128)
    d_out_l = _round_up(d_out, 128)
    d_hid_l = _round_up(d_hidden, 128)

    # ---- row-tile upper bound ------------------------------------------------
    m8 = _round_up(m, 8)
    max_tile_m = _round_up(max(8, tile_m if tile_m is not None else 1024), 8)
    # Keep >= 2 row tiles on large problems so both v7x TensorCores get work.
    if m8 > 256:
        max_tile_m = min(max_tile_m, _round_up(-(-m8 // 2), 8))
    max_tile_m = min(max_tile_m, m8)

    def _pick_tile_m(avail, per_row):
        tm = max(8, (avail // max(per_row, 1)) // 8 * 8)
        return int(min(max_tile_m, tm))

    b2_2d = b2.reshape(1, d_out)

    # ---- resident-weights fast path -------------------------------------------
    # Constant blocks counted twice (conservative: covers the case where the
    # single-buffering request is rejected and we fall back to double buffers).
    res_fixed = 2 * (_round_up(d_in, 8) * d_hid_l * w_bytes       # w1
                     + _round_up(d_hidden, 8) * d_out_l * w_bytes  # w2
                     + 8 * d_hid_l * w_bytes                       # b1 block
                     + 8 * d_out_l * w_bytes)                      # b2 block
    res_per_row = (2 * d_in_l * x_bytes      # x tile (double buffered)
                   + 2 * d_out_l * x_bytes   # out tile (double buffered)
                   + d_hid_l * 4             # h intermediate (f32)
                   + d_hid_l * w_bytes       # h cast copy for fc2
                   + d_out_l * 4)            # f32 product before output cast
    resident_ok = (budget - res_fixed) >= 8 * res_per_row
    force_ktiled = tile_k is not None and tile_k < d_hidden

    if resident_ok and not force_ktiled:
        tm = _pick_tile_m(budget - res_fixed, res_per_row)
        grid_m = -(-m // tm)
        footprint = res_fixed + tm * res_per_row
        vmem_limit = vmem_limit_bytes or int(
            min(limit_ceiling, max(32 << 20, footprint + (4 << 20))))

        def run(single_buffer_consts):
            cmode = pl.Buffered(1) if single_buffer_consts else None

            def cspec(shape):
                if cmode is None:
                    return pl.BlockSpec(shape, lambda i: (0, 0))
                return pl.BlockSpec(shape, lambda i: (0, 0),
                                    pipeline_mode=cmode)

            kernel = functools.partial(_mlp_kernel_resident,
                                       approximate=approximate_gelu)
            return pl.pallas_call(
                kernel,
                out_shape=jax.ShapeDtypeStruct((m, d_out), x.dtype),
                grid_spec=pltpu.PrefetchScalarGridSpec(
                    num_scalar_prefetch=0,
                    grid=(grid_m,),
                    in_specs=[
                        pl.BlockSpec((tm, d_in), lambda i: (i, 0)),  # x rows
                        cspec((d_in, d_hidden)),                     # w1 (once)
                        cspec((1, d_hidden)),                        # b1 (once)
                        cspec((d_hidden, d_out)),                    # w2 (once)
                        cspec((1, d_out)),                           # b2 (once)
                    ],
                    out_specs=pl.BlockSpec((tm, d_out), lambda i: (i, 0)),
                ),
                compiler_params=pltpu.CompilerParams(
                    dimension_semantics=("parallel",),
                    vmem_limit_bytes=vmem_limit,
                ),
            )(x2, w1, b1.reshape(1, d_hidden), w2, b2_2d)

        try:
            out = run(True)
        except Exception:
            out = run(False)   # backend rejected single buffering; use default
        return out.reshape(*orig_shape[:-1], d_out)

    # ---- K-tiled fallback path (weights larger than the VMEM budget) ----------
    desired_k = tile_k if tile_k is not None else 512
    desired_k = max(128, (int(desired_k) // 128) * 128)
    desired_k = min(desired_k, d_hid_l)
    if d_hidden % 128 == 0:
        # Pick a lane-aligned tile_k that divides d_hidden: no weight padding.
        q = d_hidden // 128
        tk = 128
        for d in range(1, q + 1):
            if q % d == 0 and 128 * d <= desired_k:
                tk = 128 * d
        kh = d_hidden
    else:
        tk = desired_k
        kh = _round_up(d_hidden, tk)

    w1k, b1k, w2k = w1, b1, w2
    if kh != d_hidden:
        # Exact: GELU(0)=0 and the padded w2 rows are zero.
        # TODO(synk): pre-pad the weights once outside the hot path.
        w1k = jnp.pad(w1, ((0, 0), (0, kh - d_hidden)))
        b1k = jnp.pad(b1, ((0, kh - d_hidden),))
        w2k = jnp.pad(w2, ((0, kh - d_hidden), (0, 0)))
    b1_2d = b1k.reshape(1, kh)

    k_fixed = 2 * (_round_up(d_in, 8) * tk * w_bytes   # w1 slice
                   + tk * d_out_l * w_bytes            # w2 slice
                   + 8 * tk * w_bytes                  # b1 slice
                   + 8 * d_out_l * w_bytes)            # b2 block
    k_per_row = (2 * d_in_l * x_bytes
                 + 2 * d_out_l * x_bytes
                 + tk * (4 + w_bytes)     # h (f32) + its cast copy
                 + d_out_l * 4            # partial f32 product
                 + d_out_l * 4)           # acc scratch
    tm = _pick_tile_m(budget - k_fixed, k_per_row)
    grid = (-(-m // tm), kh // tk)
    footprint = k_fixed + tm * k_per_row
    vmem_limit = vmem_limit_bytes or int(
        min(limit_ceiling, max(32 << 20, footprint + (4 << 20))))

    def run(single_buffer_consts):
        if single_buffer_consts:
            b2_spec = pl.BlockSpec((1, d_out), lambda i, k: (0, 0),
                                   pipeline_mode=pl.Buffered(1))
        else:
            b2_spec = pl.BlockSpec((1, d_out), lambda i, k: (0, 0))
        kernel = functools.partial(_mlp_kernel_ktiled,
                                   approximate=approximate_gelu)
        return pl.pallas_call(
            kernel,
            out_shape=jax.ShapeDtypeStruct((m, d_out), x.dtype),
            grid_spec=pltpu.PrefetchScalarGridSpec(
                num_scalar_prefetch=0,
                grid=grid,
                in_specs=[
                    pl.BlockSpec((tm, d_in), lambda i, k: (i, 0)),   # x rows
                    pl.BlockSpec((d_in, tk), lambda i, k: (0, k)),   # w1 slice
                    pl.BlockSpec((1, tk), lambda i, k: (0, k)),      # b1 slice
                    pl.BlockSpec((tk, d_out), lambda i, k: (k, 0)),  # w2 slice
                    b2_spec,                                         # b2
                ],
                out_specs=pl.BlockSpec((tm, d_out), lambda i, k: (i, 0)),
                scratch_shapes=[pltpu.VMEM((tm, d_out), jnp.float32)],
            ),
            compiler_params=pltpu.CompilerParams(
                dimension_semantics=("parallel", "arbitrary"),
                vmem_limit_bytes=vmem_limit,
            ),
        )(x2, w1k, b1_2d, w2k, b2_2d)

    try:
        out = run(True)
    except Exception:
        out = run(False)
    return out.reshape(*orig_shape[:-1], d_out)


# ----------------------------- reference / init ------------------------------


def init_mlp_params(key, in_features, hidden_features, out_features,
                    dtype=jnp.float32):
    """Deterministic init matching nn.Linear's default (uniform +/- 1/sqrt(fan_in))."""
    k1, k2, k3, k4 = jax.random.split(key, 4)
    bound1 = 1.0 / math.sqrt(in_features)
    bound2 = 1.0 / math.sqrt(hidden_features)
    # Stored transposed relative to PyTorch's [out, in] convention.
    w1 = jax.random.uniform(k1, (in_features, hidden_features),
                            minval=-bound1, maxval=bound1, dtype=dtype)
    b1 = jax.random.uniform(k2, (hidden_features,),
                            minval=-bound1, maxval=bound1, dtype=dtype)
    w2 = jax.random.uniform(k3, (hidden_features, out_features),
                            minval=-bound2, maxval=bound2, dtype=dtype)
    b2 = jax.random.uniform(k4, (out_features,),
                            minval=-bound2, maxval=bound2, dtype=dtype)
    return w1, b1, w2, b2


def mlp_reference(x, w1, b1, w2, b2):
    h = jnp.dot(x, w1) + b1
    h = 0.5 * h * (1.0 + jax.lax.erf(h * _INV_SQRT2))
    return jnp.dot(h, w2) + b2


if __name__ == "__main__":
    key = jax.random.PRNGKey(0)
    kx, kp, kx2, kp2 = jax.random.split(key, 4)

    # --- test 1: small shapes, resident-weights fast path ---------------------
    batch, seq, in_f, hid_f, out_f = 2, 8, 16, 32, 16
    x = jax.random.normal(kx, (batch, seq, in_f), dtype=jnp.float32)
    w1, b1, w2, b2 = init_mlp_params(kp, in_f, hid_f, out_f)

    y = jax.block_until_ready(mlp_pallas(x, w1, b1, w2, b2))
    y_ref = mlp_reference(x, w1, b1, w2, b2)
    assert y.shape == (batch, seq, out_f)
    assert jnp.allclose(y, y_ref, atol=1e-5, rtol=1e-5), \
        "mismatch vs reference (resident path)"

    # --- test 2: K-tiled path + partial edge row block (no host-side padding) --
    bb, ss, in2, hid2, out2 = 5, 8, 16, 384, 24
    x_big = jax.random.normal(kx2, (bb, ss, in2), dtype=jnp.float32)
    pw1, pb1, pw2, pb2 = init_mlp_params(kp2, in2, hid2, out2)

    y_big = jax.block_until_ready(
        mlp_pallas(x_big, pw1, pb1, pw2, pb2, tile_m=16, tile_k=128))
    y_big_ref = mlp_reference(x_big, pw1, pb1, pw2, pb2)
    assert y_big.shape == (bb, ss, out2)
    assert jnp.allclose(y_big, y_big_ref, atol=1e-4, rtol=1e-5), \
        "mismatch vs reference (K-tiled path)"

    print("KERNEL_OK")
</pallas_src>

<mosaic_0001>
module attributes {stable_mosaic.version = 11 : i64} {
  func.func @_mlp_kernel_resident(%arg0: i32, %arg1: memref<16x16xf32, #tpu.memory_space<vmem>>, %arg2: memref<16x32xf32, #tpu.memory_space<vmem>>, %arg3: memref<1x32xf32, #tpu.memory_space<vmem>>, %arg4: memref<32x16xf32, #tpu.memory_space<vmem>>, %arg5: memref<1x16xf32, #tpu.memory_space<vmem>>, %arg6: memref<16x16xf32, #tpu.memory_space<vmem>>) attributes {dimension_semantics = [#tpu.dimension_semantics<parallel>], iteration_bounds = array<i64: 1>, scalar_prefetch = 0 : i64, scratch_operands = 0 : i64, tpu.core_type = #tpu.core_type<tc>, window_params = [{transform_indices = @transform_0, window_bounds = array<i64: 16, 16>}, {pipeline_mode = #tpu.pipeline_mode<synchronous>, transform_indices = @transform_1, window_bounds = array<i64: 16, 32>}, {pipeline_mode = #tpu.pipeline_mode<synchronous>, transform_indices = @transform_2, window_bounds = array<i64: 1, 32>}, {pipeline_mode = #tpu.pipeline_mode<synchronous>, transform_indices = @transform_3, window_bounds = array<i64: 32, 16>}, {pipeline_mode = #tpu.pipeline_mode<synchronous>, transform_indices = @transform_4, window_bounds = array<i64: 1, 16>}, {transform_indices = @transform_5, window_bounds = array<i64: 16, 16>}]} {
    %c0 = arith.constant 0 : index
    %c0_0 = arith.constant 0 : index
    %0 = vector.load %arg1[%c0, %c0_0] : memref<16x16xf32, #tpu.memory_space<vmem>>, vector<16x16xf32>
    %c0_1 = arith.constant 0 : index
    %c0_2 = arith.constant 0 : index
    %1 = vector.load %arg2[%c0_1, %c0_2] : memref<16x32xf32, #tpu.memory_space<vmem>>, vector<16x32xf32>
    %cst = arith.constant dense<0.000000e+00> : vector<16x32xf32>
    %2 = tpu.matmul %0, %1, %cst {dimension_numbers = #tpu.dot_dimension_numbers<[1], [0], [0], [1], [0, 0, 1, 1], [], []>} : vector<16x16xf32>, vector<16x32xf32>, vector<16x32xf32> -> vector<16x32xf32>
    %c0_3 = arith.constant 0 : index
    %c0_4 = arith.constant 0 : index
    %3 = vector.load %arg3[%c0_3, %c0_4] : memref<1x32xf32, #tpu.memory_space<vmem>>, vector<1x32xf32>
    %4 = vector.broadcast %3 : vector<1x32xf32> to vector<16x32xf32>
    %5 = arith.addf %2, %4 : vector<16x32xf32>
    %cst_5 = arith.constant 5.000000e-01 : f32
    %6 = vector.broadcast %cst_5 : f32 to vector<16x32xf32>
    %7 = arith.mulf %6, %5 : vector<16x32xf32>
    %cst_6 = arith.constant 0.707106769 : f32
    %8 = vector.broadcast %cst_6 : f32 to vector<16x32xf32>
    %9 = arith.mulf %5, %8 : vector<16x32xf32>
    %10 = math.erf %9 : vector<16x32xf32>
    %cst_7 = arith.constant 1.000000e+00 : f32
    %11 = vector.broadcast %cst_7 : f32 to vector<16x32xf32>
    %12 = arith.addf %11, %10 : vector<16x32xf32>
    %13 = arith.mulf %7, %12 : vector<16x32xf32>
    %c0_8 = arith.constant 0 : index
    %c0_9 = arith.constant 0 : index
    %14 = vector.load %arg4[%c0_8, %c0_9] : memref<32x16xf32, #tpu.memory_space<vmem>>, vector<32x16xf32>
    %cst_10 = arith.constant dense<0.000000e+00> : vector<16x16xf32>
    %15 = tpu.matmul %13, %14, %cst_10 {dimension_numbers = #tpu.dot_dimension_numbers<[1], [0], [0], [1], [0, 0, 1, 1], [], []>} : vector<16x32xf32>, vector<32x16xf32>, vector<16x16xf32> -> vector<16x16xf32>
    %c0_11 = arith.constant 0 : index
    %c0_12 = arith.constant 0 : index
    %16 = vector.load %arg5[%c0_11, %c0_12] : memref<1x16xf32, #tpu.memory_space<vmem>>, vector<1x16xf32>
    %17 = vector.broadcast %16 : vector<1x16xf32> to vector<16x16xf32>
    %18 = arith.addf %15, %17 : vector<16x16xf32>
    %c0_13 = arith.constant 0 : index
    %c0_14 = arith.constant 0 : index
    %19 = vector.load %arg6[%c0_13, %c0_14] : memref<16x16xf32, #tpu.memory_space<vmem>>, vector<16x16xf32>
    tpu.vector_store %arg6[%c0_13, %c0_14], %18 {strides = array<i32>} : memref<16x16xf32, #tpu.memory_space<vmem>>, vector<16x16xf32>,
    return
  }
  func.func @transform_0(%arg0: i32) -> (i32, i32) {
    %c0_i32 = arith.constant 0 : i32
    %c0_i32_0 = arith.constant 0 : i32
    return %arg0, %c0_i32 : i32, i32
  }
  func.func @transform_1(%arg0: i32) -> (i32, i32) {
    %c0_i32 = arith.constant 0 : i32
    %c0_i32_0 = arith.constant 0 : i32
    %c0_i32_1 = arith.constant 0 : i32
    return %c0_i32, %c0_i32_0 : i32, i32
  }
  func.func @transform_2(%arg0: i32) -> (i32, i32) {
    %c0_i32 = arith.constant 0 : i32
    %c0_i32_0 = arith.constant 0 : i32
    %c0_i32_1 = arith.constant 0 : i32
    return %c0_i32, %c0_i32_0 : i32, i32
  }
  func.func @transform_3(%arg0: i32) -> (i32, i32) {
    %c0_i32 = arith.constant 0 : i32
    %c0_i32_0 = arith.constant 0 : i32
    %c0_i32_1 = arith.constant 0 : i32
    return %c0_i32, %c0_i32_0 : i32, i32
  }
  func.func @transform_4(%arg0: i32) -> (i32, i32) {
    %c0_i32 = arith.constant 0 : i32
    %c0_i32_0 = arith.constant 0 : i32
    %c0_i32_1 = arith.constant 0 : i32
    return %c0_i32, %c0_i32_0 : i32, i32
  }
  func.func @transform_5(%arg0: i32) -> (i32, i32) {
    %c0_i32 = arith.constant 0 : i32
    %c0_i32_0 = arith.constant 0 : i32
    return %arg0, %c0_i32 : i32, i32
  }
}

module attributes {stable_mosaic.version = 11 : i64} {
  func.func @_mlp_kernel_resident(%arg0: i32, %arg1: memref<16x16xf32, #tpu.memory_space<vmem>>, %arg2: memref<16x32xf32, #tpu.memory_space<vmem>>, %arg3: memref<1x32xf32, #tpu.memory_space<vmem>>, %arg4: memref<32x16xf32, #tpu.memory_space<vmem>>, %arg5: memref<1x16xf32, #tpu.memory_space<vmem>>, %arg6: memref<16x16xf32, #tpu.memory_space<vmem>>) attributes {dimension_semantics = [#tpu.dimension_semantics<parallel>], iteration_bounds = array<i64: 1>, scalar_prefetch = 0 : i64, scratch_operands = 0 : i64, tpu.core_type = #tpu.core_type<tc>, window_params = [{transform_indices = @transform_0, window_bounds = array<i64: 16, 16>}, {pipeline_mode = #tpu.pipeline_mode<synchronous>, transform_indices = @transform_1, window_bounds = array<i64: 16, 32>}, {pipeline_mode = #tpu.pipeline_mode<synchronous>, transform_indices = @transform_2, window_bounds = array<i64: 1, 32>}, {pipeline_mode = #tpu.pipeline_mode<synchronous>, transform_indices = @transform_3, window_bounds = array<i64: 32, 16>}, {pipeline_mode = #tpu.pipeline_mode<synchronous>, transform_indices = @transform_4, window_bounds = array<i64: 1, 16>}, {transform_indices = @transform_5, window_bounds = array<i64: 16, 16>}]} {
    %c0 = arith.constant 0 : index
    %c0_0 = arith.constant 0 : index
    %0 = vector.load %arg1[%c0, %c0_0] : memref<16x16xf32, #tpu.memory_space<vmem>>, vector<16x16xf32>
    %c0_1 = arith.constant 0 : index
    %c0_2 = arith.constant 0 : index
    %1 = vector.load %arg2[%c0_1, %c0_2] : memref<16x32xf32, #tpu.memory_space<vmem>>, vector<16x32xf32>
    %cst = arith.constant dense<0.000000e+00> : vector<16x32xf32>
    %2 = tpu.matmul %0, %1, %cst {dimension_numbers = #tpu.dot_dimension_numbers<[1], [0], [0], [1], [0, 0, 1, 1], [], []>} : vector<16x16xf32>, vector<16x32xf32>, vector<16x32xf32> -> vector<16x32xf32>
    %c0_3 = arith.constant 0 : index
    %c0_4 = arith.constant 0 : index
    %3 = vector.load %arg3[%c0_3, %c0_4] : memref<1x32xf32, #tpu.memory_space<vmem>>, vector<1x32xf32>
    %4 = vector.broadcast %3 : vector<1x32xf32> to vector<16x32xf32>
    %5 = arith.addf %2, %4 : vector<16x32xf32>
    %cst_5 = arith.constant 5.000000e-01 : f32
    %6 = vector.broadcast %cst_5 : f32 to vector<16x32xf32>
    %7 = arith.mulf %6, %5 : vector<16x32xf32>
    %cst_6 = arith.constant 0.707106769 : f32
    %8 = vector.broadcast %cst_6 : f32 to vector<16x32xf32>
    %9 = arith.mulf %5, %8 : vector<16x32xf32>
    %10 = math.erf %9 : vector<16x32xf32>
    %cst_7 = arith.constant 1.000000e+00 : f32
    %11 = vector.broadcast %cst_7 : f32 to vector<16x32xf32>
    %12 = arith.addf %11, %10 : vector<16x32xf32>
    %13 = arith.mulf %7, %12 : vector<16x32xf32>
    %c0_8 = arith.constant 0 : index
    %c0_9 = arith.constant 0 : index
    %14 = vector.load %arg4[%c0_8, %c0_9] : memref<32x16xf32, #tpu.memory_space<vmem>>, vector<32x16xf32>
    %cst_10 = arith.constant dense<0.000000e+00> : vector<16x16xf32>
    %15 = tpu.matmul %13, %14, %cst_10 {dimension_numbers = #tpu.dot_dimension_numbers<[1], [0], [0], [1], [0, 0, 1, 1], [], []>} : vector<16x32xf32>, vector<32x16xf32>, vector<16x16xf32> -> vector<16x16xf32>
    %c0_11 = arith.constant 0 : index
    %c0_12 = arith.constant 0 : index
    %16 = vector.load %arg5[%c0_11, %c0_12] : memref<1x16xf32, #tpu.memory_space<vmem>>, vector<1x16xf32>
    %17 = vector.broadcast %16 : vector<1x16xf32> to vector<16x16xf32>
    %18 = arith.addf %15, %17 : vector<16x16xf32>
    %c0_13 = arith.constant 0 : index
    %c0_14 = arith.constant 0 : index
    %19 = vector.load %arg6[%c0_13, %c0_14] : memref<16x16xf32, #tpu.memory_space<vmem>>, vector<16x16xf32>
    tpu.vector_store %arg6[%c0_13, %c0_14], %18 {strides = array<i32>} : memref<16x16xf32, #tpu.memory_space<vmem>>, vector<16x16xf32>,
    return
  }
  func.func @transform_0(%arg0: i32) -> (i32, i32) {
    %c0_i32 = arith.constant 0 : i32
    %c0_i32_0 = arith.constant 0 : i32
    return %arg0, %c0_i32 : i32, i32
  }
  func.func @transform_1(%arg0: i32) -> (i32, i32) {
    %c0_i32 = arith.constant 0 : i32
    %c0_i32_0 = arith.constant 0 : i32
    %c0_i32_1 = arith.constant 0 : i32
    return %c0_i32, %c0_i32_0 : i32, i32
  }
  func.func @transform_2(%arg0: i32) -> (i32, i32) {
    %c0_i32 = arith.constant 0 : i32
    %c0_i32_0 = arith.constant 0 : i32
    %c0_i32_1 = arith.constant 0 : i32
    return %c0_i32, %c0_i32_0 : i32, i32
  }
  func.func @transform_3(%arg0: i32) -> (i32, i32) {
    %c0_i32 = arith.constant 0 : i32
    %c0_i32_0 = arith.constant 0 : i32
    %c0_i32_1 = arith.constant 0 : i32
    return %c0_i32, %c0_i32_0 : i32, i32
  }
  func.func @transform_4(%arg0: i32) -> (i32, i32) {
    %c0_i32 = arith.constant 0 : i32
    %c0_i32_0 = arith.constant 0 : i32
    %c0_i32_1 = arith.constant 0 : i32
    return %c0_i32, %c0_i32_0 : i32, i32
  }
  func.func @transform_5(%arg0: i32) -> (i32, i32) {
    %c0_i32 = arith.constant 0 : i32
    %c0_i32_0 = arith.constant 0 : i32
    return %arg0, %c0_i32 : i32, i32
  }
}

</mosaic_0001>

<llo_original>
// kernel: tpu_custom_call.1
$region0: #{tpu_custom_call.1}
  #allocation0 [shape = 'u32[]', space=smem, size = 0x4, offset = 0x4, fixed_abs, tag = 'smem constant byte address 0x4 - core index']
  #allocation1 [shape = 'u32[72,128]{1,0:T(1,128)}', space=vmem, size = 0x9000, scoped, tag = 'internal scratch']
  %s0 = inlined_call_operand.vmem [shape: f32[16,16], index: 0, kind: input, shape index: {}]
  %s1 = inlined_call_operand.vmem [shape: f32[16,32], index: 1, kind: input, shape index: {}]
  %s2 = inlined_call_operand.vmem [shape: f32[1,32], index: 2, kind: input, shape index: {}]
  %s3 = inlined_call_operand.vmem [shape: f32[32,16], index: 3, kind: input, shape index: {}]
  %s4 = inlined_call_operand.vmem [shape: f32[1,16], index: 4, kind: input, shape index: {}]
  %s5 = inlined_call_operand.hbm [shape: f32[16,16], index: 5, kind: output, shape index: {}]
  %s6 = sld [smem:[#allocation0]]
  $region30: #{tpu_custom_call.1} parent=0
    _
  %s8 = ssub.s32 1, %s6
  %s9 = scalar_select 0, %s8, %s6
  $region1: #{tpu_custom_call.1} parent=0
    #allocation2 [shape = 'u8[8192]{0}', space=vmem, size = 0x2000, scoped, tag = 'output window, operand 0, single buffered']
    #allocation3 [shape = 's32[1]{0}', space=sflag, size = 0x4, scoped, tag = 'scoped memory for tpu_custom_call.1']
    %10 = vsyncpa [#allocation3], 0
    // Predicated region
    $region2: #{tpu_custom_call.1} parent=1 // pred_check
      _
    $region3: #{tpu_custom_call.1} parent=1 // pred_check_branch
      %12 = sbr.rel (0) target = $region5
    $region4: #{tpu_custom_call.1} parent=1 // pred_region
      _
    $region5: #{tpu_custom_call.1} parent=1 // pred_fallthru
      _
    // Predicated region
    $region6: #{tpu_custom_call.1} parent=1 // pred_check
      _
    $region7: #{tpu_custom_call.1} parent=1 // pred_check_branch
      %14 = sbr.rel (0) target = $region9
    $region8: #{tpu_custom_call.1} parent=1 // pred_region
      _
    $region9: #{tpu_custom_call.1} parent=1 // pred_fallthru
      _
    // Predicated region
    $region10: #{tpu_custom_call.1} parent=1 // pred_check
      _
    $region11: #{tpu_custom_call.1} parent=1 // pred_check_branch
      %16 = sbr.rel (0) target = $region13
    $region12: #{tpu_custom_call.1} parent=1 // pred_region
      _
    $region13: #{tpu_custom_call.1} parent=1 // pred_fallthru
      _
    // Predicated region
    $region14: #{tpu_custom_call.1} parent=1 // pred_check
      _
    $region15: #{tpu_custom_call.1} parent=1 // pred_check_branch
      %18 = sbr.rel (0) target = $region17
    $region16: #{tpu_custom_call.1} parent=1 // pred_region
      _
    $region17: #{tpu_custom_call.1} parent=1 // pred_fallthru
      _
    // Predicated region
    $region18: #{tpu_custom_call.1} parent=1 // pred_check
      _
    $region19: #{tpu_custom_call.1} parent=1 // pred_check_branch
      %20 = sbr.rel (0) target = $region21
    $region20: #{tpu_custom_call.1} parent=1 // pred_region
      _
    $region21: #{tpu_custom_call.1} parent=1 // pred_fallthru
      _
    %v21 = vld [vmem:[%s0] sm:$0xff]
    %v22 = vld [vmem:[%s0 + $0x8] sm:$0xff]
    %v23 = vld [vmem:[%s1] sm:$0xff]
    %v24 = vld [vmem:[%s1 + $0x8] sm:$0xff]
    %v25 = vld [vmem:[%s2] sm:$0x1]
    %v27 = vperm.slane %v25, 0
    %vm29 = vcmask 130048
    %v31 = vsel %vm29, %v21, 0
    %v34 = vsel %vm29, %v22, 0
    %36 = vmatpush.msra.mxu0 0.0
    %37 = vmatpush.msra.mxu0 0.0
    %38 = vmatpush.msra.mxu0 0.0
    %39 = vmatpush.msra.mxu0 0.0
    %40 = vmatpush.msra.mxu0 0.0
    %41 = vmatpush.msra.mxu0 0.0
    %42 = vmatpush.msra.mxu0 0.0
    %43 = vmatpush.msra.mxu0 0.0
    %44 = vmatpush.msra.mxu0 0.0
    %45 = vmatpush.msra.mxu0 0.0
    %46 = vmatpush.msra.mxu0 0.0
    %47 = vmatpush.msra.mxu0 0.0
    %48 = vmatpush.msra.mxu0 0.0
    %49 = vmatpush.msra.mxu0 0.0
    %50 = vmatpush.msra.mxu0 %v24
    %51 = vmatpush.msra.mxu0 %v23
    %52 = vmatmul.f32.gmra.mxu0 %v31
    %v53 = vpop.f32.mrf.mxu0
    %v54 = vadd.f32 %v27, %v53
    %55 = vmatmul.f32.gmra.mxu0 %v34
    %v56 = vpop.f32.mrf.mxu0
    %v57 = vadd.f32 %v27, %v56
    %58 = vdwg.mxu0
    %v59 = vmul.f32 %v54, 0.5
    %v60 = vmul.f32 %v57, 0.5
    %v61 = vmul.f32 %v54, 0.70710677
    %v62 = vmul.f32 %v57, 0.70710677
    %v63 = vmul.f32 %v61, %v61
    %v64 = vmin.f32 16.0, %v63
    %v65 = vmul.f32 %v64, 2.1237322e-06
    %v66 = vadd.f32 %v65, 0.00028619796
    %v67 = vmul.f32 %v64, %v66
    %v68 = vadd.f32 %v67, 0.0036580483
    %v69 = vmul.f32 %v64, %v68
    %v70 = vadd.f32 %v69, 0.05243302
    %v71 = vmul.f32 %v64, %v70
    %v72 = vadd.f32 %v71, 0.18741608
    %v73 = vmul.f32 %v64, %v72
    %v74 = vadd.f32 %v73, 1.1283791
    %v75 = vmul.f32 %v61, %v74
    %v76 = vmul.f32 %v64, 3.8918573e-05
    %v77 = vadd.f32 %v76, 0.001143296
    %v78 = vmul.f32 %v64, %v77
    %v79 = vadd.f32 %v78, 0.014752088
    %v80 = vmul.f32 %v64, %v79
    %v81 = vadd.f32 %v80, 0.112945676
    %v82 = vmul.f32 %v64, %v81
    %v83 = vadd.f32 %v82, 0.4994258
    %v84 = vmul.f32 %v64, %v83
    %v85 = vadd.f32 %v84, 1.0
    %v86 = vrcp.pop %v85
    %v87 = vmul.f32 %v85, %v86
    %v88 = vsub.f32 1.0, %v87
    %v89 = vmul.f32 %v86, %v88
    %v90 = vadd.f32 %v86, %v89
    %vm91 = vweird.f32 %v85
    %vm92 = vweird.f32 %v86
    %vm93 = vmor %vm91, %vm92
    %v94 = vsel %vm93, %v86, %v90
    %v95 = vand.u32 2147483647, %v85
    %vm96 = vcmp.eq.f32.partialorder %v95, 8.507059e+37
    %v97 = vand.u32 %v85, 2147483648
    %v98 = vor.u32 1.1754944e-38, %v97
    %v99 = vsel %vm96, %v98, %v94
    %v100 = vmul.f32 %v75, %v99
    %v101 = vmin.f32 %v100, 1.0
    %v102 = vmax.f32 %v101, -1.0
    %v103 = vmul.f32 %v62, %v62
    %v104 = vmin.f32 16.0, %v103
    %v105 = vmul.f32 %v104, 2.1237322e-06
    %v106 = vadd.f32 %v105, 0.00028619796
    %v107 = vmul.f32 %v104, %v106
    %v108 = vadd.f32 %v107, 0.0036580483
    %v109 = vmul.f32 %v104, %v108
    %v110 = vadd.f32 %v109, 0.05243302
    %v111 = vmul.f32 %v104, %v110
    %v112 = vadd.f32 %v111, 0.18741608
    %v113 = vmul.f32 %v104, %v112
    %v114 = vadd.f32 %v113, 1.1283791
    %v115 = vmul.f32 %v62, %v114
    %v116 = vmul.f32 %v104, 3.8918573e-05
    %v117 = vadd.f32 %v116, 0.001143296
    %v118 = vmul.f32 %v104, %v117
    %v119 = vadd.f32 %v118, 0.014752088
    %v120 = vmul.f32 %v104, %v119
    %v121 = vadd.f32 %v120, 0.112945676
    %v122 = vmul.f32 %v104, %v121
    %v123 = vadd.f32 %v122, 0.4994258
    %v124 = vmul.f32 %v104, %v123
    %v125 = vadd.f32 %v124, 1.0
    %v126 = vrcp.pop %v125
    %v127 = vmul.f32 %v125, %v126
    %v128 = vsub.f32 1.0, %v127
    %v129 = vmul.f32 %v126, %v128
    %v130 = vadd.f32 %v126, %v129
    %vm131 = vweird.f32 %v125
    %vm132 = vweird.f32 %v126
    %vm133 = vmor %vm131, %vm132
    %v134 = vsel %vm133, %v126, %v130
    %v135 = vand.u32 2147483647, %v125
    %vm136 = vcmp.eq.f32.partialorder %v135, 8.507059e+37
    %v137 = vand.u32 %v125, 2147483648
    %v138 = vor.u32 1.1754944e-38, %v137
    %v139 = vsel %vm136, %v138, %v134
    %v140 = vmul.f32 %v115, %v139
    %v141 = vmin.f32 %v140, 1.0
    %v142 = vmax.f32 %v141, -1.0
    %v143 = vadd.f32 %v102, 1.0
    %v144 = vadd.f32 %v142, 1.0
    %v145 = vmul.f32 %v59, %v143
    %v146 = vmul.f32 %v60, %v144
    %v147 = vld [vmem:[%s3] sm:$0xff]
    %v148 = vld [vmem:[%s3 + $0x8] sm:$0xff]
    %v149 = vld [vmem:[%s3 + $0x10] sm:$0xff]
    %v150 = vld [vmem:[%s3 + $0x18] sm:$0xff]
    %v151 = vld [vmem:[%s4] sm:$0x1]
    %v153 = vperm.slane %v151, 0
    %vm155 = vcmask 261120
    %v157 = vsel %vm155, %v145, 0
    %v160 = vsel %vm155, %v146, 0
    %162 = vmatpush.msra.mxu0 0.0
    %163 = vmatpush.msra.mxu0 0.0
    %164 = vmatpush.msra.mxu0 0.0
    %165 = vmatpush.msra.mxu0 0.0
    %166 = vmatpush.msra.mxu0 0.0
    %167 = vmatpush.msra.mxu0 0.0
    %168 = vmatpush.msra.mxu0 0.0
    %169 = vmatpush.msra.mxu0 0.0
    %170 = vmatpush.msra.mxu0 0.0
    %171 = vmatpush.msra.mxu0 0.0
    %172 = vmatpush.msra.mxu0 0.0
    %173 = vmatpush.msra.mxu0 0.0
    %174 = vmatpush.msra.mxu0 %v150
    %175 = vmatpush.msra.mxu0 %v149
    %176 = vmatpush.msra.mxu0 %v148
    %177 = vmatpush.msra.mxu0 %v147
    %178 = vmatmul.f32.gmra.mxu0 %v157
    %v179 = vpop.f32.mrf.mxu0
    %v180 = vadd.f32 %v153, %v179
    %181 = vmatmul.f32.gmra.mxu0 %v160
    %v182 = vpop.f32.mrf.mxu0
    %v183 = vadd.f32 %v153, %v182
    %184 = vdwg.mxu0
    %185 = vst.msk [vmem:[#allocation2] sm:$0xff] %vm29, %v180
    %186 = vst.msk [vmem:[#allocation2 + $0x8] sm:$0xff] %vm29, %v183
    // Predicated region
    $region22: #{tpu_custom_call.1} parent=1 // pred_check
      _
    $region23: #{tpu_custom_call.1} parent=1 // pred_check_branch
      %188 = sbr.rel (0) target = $region25
    $region24: #{tpu_custom_call.1} parent=1 // pred_region
      %190 = vsyncadd [#allocation3], 0
      %s191 = sshll.u32 [#allocation2], 4
      %s192 = int_to_ptr.vmem [resolvable:$true] %s191
      %s193 = sshll.u32 %s5, 4
      %s194 = int_to_ptr.hbm [resolvable:$true] %s193
      %199 = dma.vmem_to_hbm [thread:$0]  %s192, 256, %s194, [#allocation3], 128, 128, 8
    $region25: #{tpu_custom_call.1} parent=1 // pred_fallthru
      _
    // Predicated region
    $region26: #{tpu_custom_call.1} parent=1 // pred_check
      _
    $region27: #{tpu_custom_call.1} parent=1 // pred_check_branch
      %201 = sbr.rel (0) target = $region29
    $region28: #{tpu_custom_call.1} parent=1 // pred_region
      %203 = dma.done [#allocation3], 256
    $region29: #{tpu_custom_call.1} parent=1 // pred_fallthru
      _
    %204 = vsyncpa [#allocation3], 1

// kernel: tpu_custom_call.1
$region0: #{tpu_custom_call.1}
  #allocation0 [shape = 'u32[]', space=smem, size = 0x4, offset = 0x4, fixed_abs, tag = 'smem constant byte address 0x4 - core index']
  #allocation1 [shape = 'u32[72,128]{1,0:T(1,128)}', space=vmem, size = 0x9000, scoped, tag = 'internal scratch']
  %s0 = inlined_call_operand.vmem [shape: f32[16,16], index: 0, kind: input, shape index: {}]
  %s1 = inlined_call_operand.vmem [shape: f32[16,32], index: 1, kind: input, shape index: {}]
  %s2 = inlined_call_operand.vmem [shape: f32[1,32], index: 2, kind: input, shape index: {}]
  %s3 = inlined_call_operand.vmem [shape: f32[32,16], index: 3, kind: input, shape index: {}]
  %s4 = inlined_call_operand.vmem [shape: f32[1,16], index: 4, kind: input, shape index: {}]
  %s5 = inlined_call_operand.hbm [shape: f32[16,16], index: 5, kind: output, shape index: {}]
  %s6 = sld [smem:[#allocation0]]
  $region30: #{tpu_custom_call.1} parent=0
    _
  %s8 = ssub.s32 1, %s6
  %s9 = scalar_select 0, %s8, %s6
  $region1: #{tpu_custom_call.1} parent=0
    #allocation2 [shape = 'u8[8192]{0}', space=vmem, size = 0x2000, scoped, tag = 'output window, operand 0, single buffered']
    #allocation3 [shape = 's32[1]{0}', space=sflag, size = 0x4, scoped, tag = 'scoped memory for tpu_custom_call.1']
    %10 = vsyncpa [#allocation3], 0
    // Predicated region
    $region2: #{tpu_custom_call.1} parent=1 // pred_check
      _
    $region3: #{tpu_custom_call.1} parent=1 // pred_check_branch
      %12 = sbr.rel (0) target = $region5
    $region4: #{tpu_custom_call.1} parent=1 // pred_region
      _
    $region5: #{tpu_custom_call.1} parent=1 // pred_fallthru
      _
    // Predicated region
    $region6: #{tpu_custom_call.1} parent=1 // pred_check
      _
    $region7: #{tpu_custom_call.1} parent=1 // pred_check_branch
      %14 = sbr.rel (0) target = $region9
    $region8: #{tpu_custom_call.1} parent=1 // pred_region
      _
    $region9: #{tpu_custom_call.1} parent=1 // pred_fallthru
      _
    // Predicated region
    $region10: #{tpu_custom_call.1} parent=1 // pred_check
      _
    $region11: #{tpu_custom_call.1} parent=1 // pred_check_branch
      %16 = sbr.rel (0) target = $region13
    $region12: #{tpu_custom_call.1} parent=1 // pred_region
      _
    $region13: #{tpu_custom_call.1} parent=1 // pred_fallthru
      _
    // Predicated region
    $region14: #{tpu_custom_call.1} parent=1 // pred_check
      _
    $region15: #{tpu_custom_call.1} parent=1 // pred_check_branch
      %18 = sbr.rel (0) target = $region17
    $region16: #{tpu_custom_call.1} parent=1 // pred_region
      _
    $region17: #{tpu_custom_call.1} parent=1 // pred_fallthru
      _
    // Predicated region
    $region18: #{tpu_custom_call.1} parent=1 // pred_check
      _
    $region19: #{tpu_custom_call.1} parent=1 // pred_check_branch
      %20 = sbr.rel (0) target = $region21
    $region20: #{tpu_custom_call.1} parent=1 // pred_region
      _
    $region21: #{tpu_custom_call.1} parent=1 // pred_fallthru
      _
    %v21 = vld [vmem:[%s0] sm:$0xff]
    %v22 = vld [vmem:[%s0 + $0x8] sm:$0xff]
    %v23 = vld [vmem:[%s1] sm:$0xff]
    %v24 = vld [vmem:[%s1 + $0x8] sm:$0xff]
    %v25 = vld [vmem:[%s2] sm:$0x1]
    %v27 = vperm.slane %v25, 0
    %vm29 = vcmask 130048
    %v31 = vsel %vm29, %v21, 0
    %v34 = vsel %vm29, %v22, 0
    %36 = vmatpush.msra.mxu0 0.0
    %37 = vmatpush.msra.mxu0 0.0
    %38 = vmatpush.msra.mxu0 0.0
    %39 = vmatpush.msra.mxu0 0.0
    %40 = vmatpush.msra.mxu0 0.0
    %41 = vmatpush.msra.mxu0 0.0
    %42 = vmatpush.msra.mxu0 0.0
    %43 = vmatpush.msra.mxu0 0.0
    %44 = vmatpush.msra.mxu0 0.0
    %45 = vmatpush.msra.mxu0 0.0
    %46 = vmatpush.msra.mxu0 0.0
    %47 = vmatpush.msra.mxu0 0.0
    %48 = vmatpush.msra.mxu0 0.0
    %49 = vmatpush.msra.mxu0 0.0
    %50 = vmatpush.msra.mxu0 %v24
    %51 = vmatpush.msra.mxu0 %v23
    %52 = vmatmul.f32.gmra.mxu0 %v31
    %v53 = vpop.f32.mrf.mxu0
    %v54 = vadd.f32 %v27, %v53
    %55 = vmatmul.f32.gmra.mxu0 %v34
    %v56 = vpop.f32.mrf.mxu0
    %v57 = vadd.f32 %v27, %v56
    %58 = vdwg.mxu0
    %v59 = vmul.f32 %v54, 0.5
    %v60 = vmul.f32 %v57, 0.5
    %v61 = vmul.f32 %v54, 0.70710677
    %v62 = vmul.f32 %v57, 0.70710677
    %v63 = vmul.f32 %v61, %v61
    %v64 = vmin.f32 16.0, %v63
    %v65 = vmul.f32 %v64, 2.1237322e-06
    %v66 = vadd.f32 %v65, 0.00028619796
    %v67 = vmul.f32 %v64, %v66
    %v68 = vadd.f32 %v67, 0.0036580483
    %v69 = vmul.f32 %v64, %v68
    %v70 = vadd.f32 %v69, 0.05243302
    %v71 = vmul.f32 %v64, %v70
    %v72 = vadd.f32 %v71, 0.18741608
    %v73 = vmul.f32 %v64, %v72
    %v74 = vadd.f32 %v73, 1.1283791
    %v75 = vmul.f32 %v61, %v74
    %v76 = vmul.f32 %v64, 3.8918573e-05
    %v77 = vadd.f32 %v76, 0.001143296
    %v78 = vmul.f32 %v64, %v77
    %v79 = vadd.f32 %v78, 0.014752088
    %v80 = vmul.f32 %v64, %v79
    %v81 = vadd.f32 %v80, 0.112945676
    %v82 = vmul.f32 %v64, %v81
    %v83 = vadd.f32 %v82, 0.4994258
    %v84 = vmul.f32 %v64, %v83
    %v85 = vadd.f32 %v84, 1.0
    %v86 = vrcp.pop %v85
    %v87 = vmul.f32 %v85, %v86
    %v88 = vsub.f32 1.0, %v87
    %v89 = vmul.f32 %v86, %v88
    %v90 = vadd.f32 %v86, %v89
    %vm91 = vweird.f32 %v85
    %vm92 = vweird.f32 %v86
    %vm93 = vmor %vm91, %vm92
    %v94 = vsel %vm93, %v86, %v90
    %v95 = vand.u32 2147483647, %v85
    %vm96 = vcmp.eq.f32.partialorder %v95, 8.507059e+37
    %v97 = vand.u32 %v85, 2147483648
    %v98 = vor.u32 1.1754944e-38, %v97
    %v99 = vsel %vm96, %v98, %v94
    %v100 = vmul.f32 %v75, %v99
    %v101 = vmin.f32 %v100, 1.0
    %v102 = vmax.f32 %v101, -1.0
    %v103 = vmul.f32 %v62, %v62
    %v104 = vmin.f32 16.0, %v103
    %v105 = vmul.f32 %v104, 2.1237322e-06
    %v106 = vadd.f32 %v105, 0.00028619796
    %v107 = vmul.f32 %v104, %v106
    %v108 = vadd.f32 %v107, 0.0036580483
    %v109 = vmul.f32 %v104, %v108
    %v110 = vadd.f32 %v109, 0.05243302
    %v111 = vmul.f32 %v104, %v110
    %v112 = vadd.f32 %v111, 0.18741608
    %v113 = vmul.f32 %v104, %v112
    %v114 = vadd.f32 %v113, 1.1283791
    %v115 = vmul.f32 %v62, %v114
    %v116 = vmul.f32 %v104, 3.8918573e-05
    %v117 = vadd.f32 %v116, 0.001143296
    %v118 = vmul.f32 %v104, %v117
    %v119 = vadd.f32 %v118, 0.014752088
    %v120 = vmul.f32 %v104, %v119
    %v121 = vadd.f32 %v120, 0.112945676
    %v122 = vmul.f32 %v104, %v121
    %v123 = vadd.f32 %v122, 0.4994258
    %v124 = vmul.f32 %v104, %v123
    %v125 = vadd.f32 %v124, 1.0
    %v126 = vrcp.pop %v125
    %v127 = vmul.f32 %v125, %v126
    %v128 = vsub.f32 1.0, %v127
    %v129 = vmul.f32 %v126, %v128
    %v130 = vadd.f32 %v126, %v129
    %vm131 = vweird.f32 %v125
    %vm132 = vweird.f32 %v126
    %vm133 = vmor %vm131, %vm132
    %v134 = vsel %vm133, %v126, %v130
    %v135 = vand.u32 2147483647, %v125
    %vm136 = vcmp.eq.f32.partialorder %v135, 8.507059e+37
    %v137 = vand.u32 %v125, 2147483648
    %v138 = vor.u32 1.1754944e-38, %v137
    %v139 = vsel %vm136, %v138, %v134
    %v140 = vmul.f32 %v115, %v139
    %v141 = vmin.f32 %v140, 1.0
    %v142 = vmax.f32 %v141, -1.0
    %v143 = vadd.f32 %v102, 1.0
    %v144 = vadd.f32 %v142, 1.0
    %v145 = vmul.f32 %v59, %v143
    %v146 = vmul.f32 %v60, %v144
    %v147 = vld [vmem:[%s3] sm:$0xff]
    %v148 = vld [vmem:[%s3 + $0x8] sm:$0xff]
    %v149 = vld [vmem:[%s3 + $0x10] sm:$0xff]
    %v150 = vld [vmem:[%s3 + $0x18] sm:$0xff]
    %v151 = vld [vmem:[%s4] sm:$0x1]
    %v153 = vperm.slane %v151, 0
    %vm155 = vcmask 261120
    %v157 = vsel %vm155, %v145, 0
    %v160 = vsel %vm155, %v146, 0
    %162 = vmatpush.msra.mxu0 0.0
    %163 = vmatpush.msra.mxu0 0.0
    %164 = vmatpush.msra.mxu0 0.0
    %165 = vmatpush.msra.mxu0 0.0
    %166 = vmatpush.msra.mxu0 0.0
    %167 = vmatpush.msra.mxu0 0.0
    %168 = vmatpush.msra.mxu0 0.0
    %169 = vmatpush.msra.mxu0 0.0
    %170 = vmatpush.msra.mxu0 0.0
    %171 = vmatpush.msra.mxu0 0.0
    %172 = vmatpush.msra.mxu0 0.0
    %173 = vmatpush.msra.mxu0 0.0
    %174 = vmatpush.msra.mxu0 %v150
    %175 = vmatpush.msra.mxu0 %v149
    %176 = vmatpush.msra.mxu0 %v148
    %177 = vmatpush.msra.mxu0 %v147
    %178 = vmatmul.f32.gmra.mxu0 %v157
    %v179 = vpop.f32.mrf.mxu0
    %v180 = vadd.f32 %v153, %v179
    %181 = vmatmul.f32.gmra.mxu0 %v160
    %v182 = vpop.f32.mrf.mxu0
    %v183 = vadd.f32 %v153, %v182
    %184 = vdwg.mxu0
    %185 = vst.msk [vmem:[#allocation2] sm:$0xff] %vm29, %v180
    %186 = vst.msk [vmem:[#allocation2 + $0x8] sm:$0xff] %vm29, %v183
    // Predicated region
    $region22: #{tpu_custom_call.1} parent=1 // pred_check
      _
    $region23: #{tpu_custom_call.1} parent=1 // pred_check_branch
      %188 = sbr.rel (0) target = $region25
    $region24: #{tpu_custom_call.1} parent=1 // pred_region
      %190 = vsyncadd [#allocation3], 0
      %s191 = sshll.u32 [#allocation2], 4
      %s192 = int_to_ptr.vmem [resolvable:$true] %s191
      %s193 = sshll.u32 %s5, 4
      %s194 = int_to_ptr.hbm [resolvable:$true] %s193
      %199 = dma.vmem_to_hbm [thread:$0]  %s192, 256, %s194, [#allocation3], 128, 128, 8
    $region25: #{tpu_custom_call.1} parent=1 // pred_fallthru
      _
    // Predicated region
    $region26: #{tpu_custom_call.1} parent=1 // pred_check
      _
    $region27: #{tpu_custom_call.1} parent=1 // pred_check_branch
      %201 = sbr.rel (0) target = $region29
    $region28: #{tpu_custom_call.1} parent=1 // pred_region
      %203 = dma.done [#allocation3], 256
    $region29: #{tpu_custom_call.1} parent=1 // pred_fallthru
      _
    %204 = vsyncpa [#allocation3], 1

</llo_original>
